<compile_context>
chip_gen: v5e
topology: v5e:2x2
jax: 0.10.0
libtpu: 0.0.40
codegen_flags: <defaults>
</compile_context>

<pallas_src>
import functools

import jax
import jax.numpy as jnp
from jax.experimental import pallas as pl
from jax.experimental.pallas import tpu as pltpu

LANES = 128
_SUBLANE = {4: 8, 2: 16, 1: 32}   # min sublane multiple per dtype itemsize
_CHUNK_ROWS = 512                  # inner-chunk rows (multiple of 32 -> valid for f32/bf16/i8)


def _num_tensorcores():
    """2 on v7x-class chips (2 TCs/chip), else 1 (v5e/v6e are 1 TC/chip)."""
    try:
        kind = jax.devices()[0].device_kind.lower()
    except Exception:
        return 1
    return 2 if ("v7" in kind or "7x" in kind) else 1


def _vmem_capacity_bytes():
    try:
        return int(pltpu.get_tpu_info().vmem_capacity_bytes)
    except Exception:
        return 64 << 20   # v7x physical size = the smallest across supported parts


def _dice_bce_kernel(pred_ref, targ_ref, out_ref, *,
                     block_rows, chunk_rows, tail_rows, binary_target):
    """Accumulates (BCE-sum, (p*t)-sum, p-sum, t-sum) as four (8,128) f32 vregs into
    the resident output block; cross-lane reduction is deferred to the JAX wrapper."""
    j = pl.program_id(1)
    nsteps = pl.num_programs(1)

    @pl.when(j == 0)
    def _():
        out_ref[...] = jnp.zeros_like(out_ref)

    n_chunks = block_rows // chunk_rows
    n_fold = chunk_rows // 8

    def partial_sums(row_limit):
        # row_limit=None -> full tile, no masking; otherwise rows >= row_limit are
        # zeroed BEFORE the logs (p=0,t=0 contributes exactly 0 under the -100 clamp).
        def body(c, carry):
            bce_a, pt_a, p_a, t_a = carry
            r0 = pl.multiple_of(c * chunk_rows, chunk_rows)
            p = pred_ref[0, pl.ds(r0, chunk_rows), :].astype(jnp.float32)
            t = targ_ref[0, pl.ds(r0, chunk_rows), :].astype(jnp.float32)
            if row_limit is not None:
                ridx = jax.lax.broadcasted_iota(jnp.int32, (chunk_rows, 1), 0) + r0
                keep = ridx < row_limit
                p = jnp.where(keep, p, 0.0)
                t = jnp.where(keep, t, 0.0)
            if binary_target:
                # Opt-in fast path (one log per element) when target is exactly 0/1.
                bce = -jnp.maximum(jnp.log(jnp.where(t >= 0.5, p, 1.0 - p)), -100.0)
            else:
                # nn.BCELoss semantics: -(t*log(p) + (1-t)*log(1-p)), logs clamped at
                # -100, rewritten as -(log1mp + t*(logp - log1mp)) to drop one vmul.
                log_p = jnp.maximum(jnp.log(p), -100.0)
                log_1mp = jnp.maximum(jnp.log(1.0 - p), -100.0)
                bce = -(log_1mp + t * (log_p - log_1mp))

            def fold(x):  # (chunk_rows, 128) -> (8, 128); pure VPU vreg adds, no XLU
                return x.reshape(n_fold, 8, LANES).sum(axis=0)

            return (bce_a + fold(bce), pt_a + fold(p * t),
                    p_a + fold(p), t_a + fold(t))

        zero = jnp.zeros((8, LANES), jnp.float32)
        return jax.lax.fori_loop(0, n_chunks, body, (zero, zero, zero, zero),
                                 unroll=True)

    def accumulate(row_limit):
        bce_s, pt_s, p_s, t_s = partial_sums(row_limit)
        out_ref[0, 0] += bce_s
        out_ref[0, 1] += pt_s
        out_ref[0, 2] += p_s
        out_ref[0, 3] += t_s

    if tail_rows == block_rows:
        # Tile divides the row count: no masking anywhere.
        accumulate(None)
    else:
        @pl.when(j < nsteps - 1)
        def _():
            accumulate(None)

        @pl.when(j == nsteps - 1)
        def _():
            # Only the final (partial) tile pays for the row mask.
            accumulate(tail_rows)


def dice_bce_loss(pred, target, *, max_block_rows=8192, binary_target=False):
    """Pallas equivalent of DiceBCELoss().forward(pred, target). Returns f32 scalar."""
    assert pred.shape == target.shape
    n_valid = 1
    for d in pred.shape:
        n_valid *= d

    itemsize = pred.dtype.itemsize
    sub = _SUBLANE.get(itemsize, 8)

    p_flat = pred.reshape(-1)
    t_flat = target.reshape(-1)

    # Split the reduction across 2 TensorCores only where they exist (v7x megacore);
    # on 1-TC parts (v5e/v6e) the extra "parallel" axis is just a serial loop.
    ns = 2 if (_num_tensorcores() >= 2 and n_valid >= 2 * LANES * sub * 8) else 1

    align = LANES * sub * ns
    n_main = (n_valid // align) * align    # kernel covers this aligned prefix only

    bce_sum = jnp.float32(0.0)
    pt_sum = jnp.float32(0.0)
    p_sum = jnp.float32(0.0)
    t_sum = jnp.float32(0.0)

    if n_main > 0:
        rows_per_split = n_main // (LANES * ns)        # multiple of sub

        # Tile size: as big as fits, with a generation-aware VMEM cap
        # (v7x: 64 MiB physical vs 128 MiB on v5e/v6e).
        in_budget = min(_vmem_capacity_bytes() // 2, 32 << 20)
        max_rows_vmem = max(sub, in_budget // (2 * 2 * LANES * itemsize))
        block_rows = min(max_block_rows, rows_per_split, max_rows_vmem)
        if block_rows >= _CHUNK_ROWS:
            chunk_rows = _CHUNK_ROWS
            block_rows = (block_rows // chunk_rows) * chunk_rows
        else:
            block_rows = max(sub, (block_rows // sub) * sub)
            chunk_rows = block_rows
        steps = pl.cdiv(rows_per_split, block_rows)
        tail_rows = rows_per_split - (steps - 1) * block_rows   # in (0, block_rows]

        p3 = p_flat[:n_main].reshape(ns, rows_per_split, LANES)
        t3 = t_flat[:n_main].reshape(ns, rows_per_split, LANES)

        # 2 inputs x 2 pipeline buffers + resident output block + f32 chunk temporaries.
        needed = (2 * 2 * block_rows * LANES * itemsize
                  + 2 * 4 * 8 * LANES * 4
                  + 8 * chunk_rows * LANES * 4)
        vmem_bytes = int(min(max(needed + (8 << 20), 24 << 20), 40 << 20))

        partials = pl.pallas_call(
            functools.partial(_dice_bce_kernel, block_rows=block_rows,
                              chunk_rows=chunk_rows, tail_rows=tail_rows,
                              binary_target=binary_target),
            out_shape=jax.ShapeDtypeStruct((ns, 4, 8, LANES), jnp.float32),
            grid=(ns, steps),
            in_specs=[
                pl.BlockSpec((1, block_rows, LANES), lambda c, j: (c, j, 0)),
                pl.BlockSpec((1, block_rows, LANES), lambda c, j: (c, j, 0)),
            ],
            out_specs=pl.BlockSpec((1, 4, 8, LANES), lambda c, j: (c, 0, 0, 0)),
            compiler_params=pltpu.CompilerParams(
                dimension_semantics=("parallel", "arbitrary"),
                vmem_limit_bytes=vmem_bytes),
        )(p3, t3)

        sums = jnp.sum(partials, axis=(0, 2, 3))        # (4,) f32
        bce_sum, pt_sum, p_sum, t_sum = sums[0], sums[1], sums[2], sums[3]

    if n_main < n_valid:
        # Sub-tile remainder (< 128*sub*ns elements): fold into the tiny JAX epilogue
        # instead of materializing a padded copy of the whole input.
        p_t = p_flat[n_main:].astype(jnp.float32)
        t_t = t_flat[n_main:].astype(jnp.float32)
        log_p = jnp.maximum(jnp.log(p_t), -100.0)
        log_1mp = jnp.maximum(jnp.log(1.0 - p_t), -100.0)
        bce_sum = bce_sum + jnp.sum(-(log_1mp + t_t * (log_p - log_1mp)))
        pt_sum = pt_sum + jnp.sum(p_t * t_t)
        p_sum = p_sum + jnp.sum(p_t)
        t_sum = t_sum + jnp.sum(t_t)

    bce_loss = bce_sum / float(n_valid)                 # BCELoss reduction='mean'
    dice_loss = 1.0 - (2.0 * pt_sum + 1e-05) / (p_sum + t_sum + 1e-05)
    return 0.5 * bce_loss + 0.5 * dice_loss


def _reference(pred, target):
    p = pred.astype(jnp.float32)
    t = target.astype(jnp.float32)
    bce = jnp.mean(-(t * jnp.maximum(jnp.log(p), -100.0)
                     + (1.0 - t) * jnp.maximum(jnp.log(1.0 - p), -100.0)))
    dice = 1.0 - (2.0 * jnp.sum(p * t) + 1e-05) / (jnp.sum(p) + jnp.sum(t) + 1e-05)
    return 0.5 * bce + 0.5 * dice


def _make_inputs(key, shape):
    kp, kt = jax.random.split(key)
    pred = jax.nn.sigmoid(jax.random.normal(kp, shape, dtype=jnp.float32))
    target = (jax.random.uniform(kt, shape, dtype=jnp.float32) > 0.5).astype(jnp.float32)
    return pred, target


if __name__ == "__main__":
    key = jax.random.PRNGKey(0)

    # Main case: NCHW inputs, pred are probabilities (post-sigmoid), binary mask target.
    pred, target = _make_inputs(key, (2, 4, 16, 16))
    loss = jax.block_until_ready(dice_bce_loss(pred, target))
    ref = jax.block_until_ready(_reference(pred, target))
    assert jnp.allclose(loss, ref, rtol=1e-5, atol=1e-5), (loss, ref)

    # Exercise the in-kernel tail-mask path (rows not a multiple of the block size).
    pred2, target2 = _make_inputs(jax.random.PRNGKey(1), (1, 1, 40, 128))
    loss2 = jax.block_until_ready(dice_bce_loss(pred2, target2, max_block_rows=16))
    ref2 = jax.block_until_ready(_reference(pred2, target2))
    assert jnp.allclose(loss2, ref2, rtol=1e-5, atol=1e-5), (loss2, ref2)

    # Exercise the unaligned-size epilogue path (no full-array pad copy).
    pred3, target3 = _make_inputs(jax.random.PRNGKey(2), (3, 5, 7, 11))
    loss3 = jax.block_until_ready(dice_bce_loss(pred3, target3))
    ref3 = jax.block_until_ready(_reference(pred3, target3))
    assert jnp.allclose(loss3, ref3, rtol=1e-5, atol=1e-5), (loss3, ref3)

    print("KERNEL_OK")
</pallas_src>

<mosaic_0001>
module attributes {stable_mosaic.version = 11 : i64} {
  func.func @_dice_bce_kernel(%arg0: i32, %arg1: i32, %arg2: memref<1x16x128xf32, #tpu.memory_space<vmem>>, %arg3: memref<1x16x128xf32, #tpu.memory_space<vmem>>, %arg4: memref<1x4x8x128xf32, #tpu.memory_space<vmem>>) attributes {dimension_semantics = [#tpu.dimension_semantics<parallel>, #tpu.dimension_semantics<arbitrary>], iteration_bounds = array<i64: 1, 1>, scalar_prefetch = 0 : i64, scratch_operands = 0 : i64, tpu.core_type = #tpu.core_type<tc>, window_params = [{transform_indices = @transform_0, window_bounds = array<i64: 1, 16, 128>}, {transform_indices = @transform_1, window_bounds = array<i64: 1, 16, 128>}, {transform_indices = @transform_2, window_bounds = array<i64: 1, 4, 8, 128>}]} {
    %c0_i32 = arith.constant 0 : i32
    %0 = arith.cmpi eq, %arg1, %c0_i32 : i32
    %1 = arith.extui %0 : i1 to i32
    %c0_i32_0 = arith.constant 0 : i32
    %2 = arith.cmpi ne, %1, %c0_i32_0 : i32
    scf.if %2 {
      %cst_42 = arith.constant 0.000000e+00 : f32
      %62 = vector.broadcast %cst_42 : f32 to vector<1x4x8x128xf32>
      %c0_43 = arith.constant 0 : index
      %c0_44 = arith.constant 0 : index
      %c0_45 = arith.constant 0 : index
      %c0_46 = arith.constant 0 : index
      %63 = vector.load %arg4[%c0_43, %c0_44, %c0_45, %c0_46] : memref<1x4x8x128xf32, #tpu.memory_space<vmem>>, vector<1x4x8x128xf32>
      tpu.vector_store %arg4[%c0_43, %c0_44, %c0_45, %c0_46], %62 {strides = array<i32>} : memref<1x4x8x128xf32, #tpu.memory_space<vmem>>, vector<1x4x8x128xf32>,
    } else {
    }
    %cst = arith.constant 0.000000e+00 : f32
    %3 = vector.broadcast %cst : f32 to vector<8x128xf32>
    %c0_i32_1 = arith.constant 0 : i32
    %c16_i32 = arith.constant 16 : i32
    %4 = arith.muli %c0_i32_1, %c16_i32 : i32
    %5 = tpu.assume_multiple %4, 16 : i32
    %c0 = arith.constant 0 : index
    %6 = arith.index_cast %5 : i32 to index
    %c0_2 = arith.constant 0 : index
    %7 = vector.load %arg2[%c0, %6, %c0_2] : memref<1x16x128xf32, #tpu.memory_space<vmem>>, vector<1x16x128xf32>
    %8 = vector.shape_cast %7 : vector<1x16x128xf32> to vector<16x128xf32>
    %c0_3 = arith.constant 0 : index
    %9 = arith.index_cast %5 : i32 to index
    %c0_4 = arith.constant 0 : index
    %10 = vector.load %arg3[%c0_3, %9, %c0_4] : memref<1x16x128xf32, #tpu.memory_space<vmem>>, vector<1x16x128xf32>
    %11 = vector.shape_cast %10 : vector<1x16x128xf32> to vector<16x128xf32>
    %12 = math.log %8 : vector<16x128xf32>
    %cst_5 = arith.constant -1.000000e+02 : f32
    %13 = vector.broadcast %cst_5 : f32 to vector<16x128xf32>
    %14 = arith.maximumf %12, %13 : vector<16x128xf32>
    %cst_6 = arith.constant 1.000000e+00 : f32
    %15 = vector.broadcast %cst_6 : f32 to vector<16x128xf32>
    %16 = arith.subf %15, %8 : vector<16x128xf32>
    %17 = math.log %16 : vector<16x128xf32>
    %cst_7 = arith.constant -1.000000e+02 : f32
    %18 = vector.broadcast %cst_7 : f32 to vector<16x128xf32>
    %19 = arith.maximumf %17, %18 : vector<16x128xf32>
    %20 = arith.subf %14, %19 : vector<16x128xf32>
    %21 = arith.mulf %11, %20 : vector<16x128xf32>
    %22 = arith.addf %19, %21 : vector<16x128xf32>
    %cst_8 = arith.constant 0.000000e+00 : f32
    %23 = vector.broadcast %cst_8 : f32 to vector<16x128xf32>
    %24 = arith.subf %23, %22 : vector<16x128xf32>
    %25 = vector.shape_cast %24 : vector<16x128xf32> to vector<2x8x128xf32>
    %cst_9 = arith.constant dense<0.000000e+00> : vector<8x128xf32>
    %26 = vector.multi_reduction <add>, %25, %cst_9 [0] : vector<2x8x128xf32> to vector<8x128xf32>
    %27 = arith.addf %3, %26 : vector<8x128xf32>
    %28 = arith.mulf %8, %11 : vector<16x128xf32>
    %29 = vector.shape_cast %28 : vector<16x128xf32> to vector<2x8x128xf32>
    %cst_10 = arith.constant dense<0.000000e+00> : vector<8x128xf32>
    %30 = vector.multi_reduction <add>, %29, %cst_10 [0] : vector<2x8x128xf32> to vector<8x128xf32>
    %31 = arith.addf %3, %30 : vector<8x128xf32>
    %32 = vector.shape_cast %8 : vector<16x128xf32> to vector<2x8x128xf32>
    %cst_11 = arith.constant dense<0.000000e+00> : vector<8x128xf32>
    %33 = vector.multi_reduction <add>, %32, %cst_11 [0] : vector<2x8x128xf32> to vector<8x128xf32>
    %34 = arith.addf %3, %33 : vector<8x128xf32>
    %35 = vector.shape_cast %11 : vector<16x128xf32> to vector<2x8x128xf32>
    %cst_12 = arith.constant dense<0.000000e+00> : vector<8x128xf32>
    %36 = vector.multi_reduction <add>, %35, %cst_12 [0] : vector<2x8x128xf32> to vector<8x128xf32>
    %37 = arith.addf %3, %36 : vector<8x128xf32>
    %c1_i32 = arith.constant 1 : i32
    %c0_13 = arith.constant 0 : index
    %c0_14 = arith.constant 0 : index
    %c0_15 = arith.constant 0 : index
    %c0_16 = arith.constant 0 : index
    %38 = vector.load %arg4[%c0_13, %c0_14, %c0_15, %c0_16] : memref<1x4x8x128xf32, #tpu.memory_space<vmem>>, vector<1x1x8x128xf32>
    %39 = vector.shape_cast %38 : vector<1x1x8x128xf32> to vector<8x128xf32>
    %40 = arith.addf %39, %27 : vector<8x128xf32>
    %c0_17 = arith.constant 0 : index
    %c0_18 = arith.constant 0 : index
    %c0_19 = arith.constant 0 : index
    %c0_20 = arith.constant 0 : index
    %41 = vector.load %arg4[%c0_17, %c0_18, %c0_19, %c0_20] : memref<1x4x8x128xf32, #tpu.memory_space<vmem>>, vector<1x1x8x128xf32>
    %42 = vector.shape_cast %41 : vector<1x1x8x128xf32> to vector<8x128xf32>
    %43 = vector.shape_cast %40 : vector<8x128xf32> to vector<1x1x8x128xf32>
    tpu.vector_store %arg4[%c0_17, %c0_18, %c0_19, %c0_20], %43 {strides = array<i32>} : memref<1x4x8x128xf32, #tpu.memory_space<vmem>>, vector<1x1x8x128xf32>,
    %c0_21 = arith.constant 0 : index
    %c1 = arith.constant 1 : index
    %c0_22 = arith.constant 0 : index
    %c0_23 = arith.constant 0 : index
    %44 = vector.load %arg4[%c0_21, %c1, %c0_22, %c0_23] : memref<1x4x8x128xf32, #tpu.memory_space<vmem>>, vector<1x1x8x128xf32>
    %45 = vector.shape_cast %44 : vector<1x1x8x128xf32> to vector<8x128xf32>
    %46 = arith.addf %45, %31 : vector<8x128xf32>
    %c0_24 = arith.constant 0 : index
    %c1_25 = arith.constant 1 : index
    %c0_26 = arith.constant 0 : index
    %c0_27 = arith.constant 0 : index
    %47 = vector.load %arg4[%c0_24, %c1_25, %c0_26, %c0_27] : memref<1x4x8x128xf32, #tpu.memory_space<vmem>>, vector<1x1x8x128xf32>
    %48 = vector.shape_cast %47 : vector<1x1x8x128xf32> to vector<8x128xf32>
    %49 = vector.shape_cast %46 : vector<8x128xf32> to vector<1x1x8x128xf32>
    tpu.vector_store %arg4[%c0_24, %c1_25, %c0_26, %c0_27], %49 {strides = array<i32>} : memref<1x4x8x128xf32, #tpu.memory_space<vmem>>, vector<1x1x8x128xf32>,
    %c0_28 = arith.constant 0 : index
    %c2 = arith.constant 2 : index
    %c0_29 = arith.constant 0 : index
    %c0_30 = arith.constant 0 : index
    %50 = vector.load %arg4[%c0_28, %c2, %c0_29, %c0_30] : memref<1x4x8x128xf32, #tpu.memory_space<vmem>>, vector<1x1x8x128xf32>
    %51 = vector.shape_cast %50 : vector<1x1x8x128xf32> to vector<8x128xf32>
    %52 = arith.addf %51, %34 : vector<8x128xf32>
    %c0_31 = arith.constant 0 : index
    %c2_32 = arith.constant 2 : index
    %c0_33 = arith.constant 0 : index
    %c0_34 = arith.constant 0 : index
    %53 = vector.load %arg4[%c0_31, %c2_32, %c0_33, %c0_34] : memref<1x4x8x128xf32, #tpu.memory_space<vmem>>, vector<1x1x8x128xf32>
    %54 = vector.shape_cast %53 : vector<1x1x8x128xf32> to vector<8x128xf32>
    %55 = vector.shape_cast %52 : vector<8x128xf32> to vector<1x1x8x128xf32>
    tpu.vector_store %arg4[%c0_31, %c2_32, %c0_33, %c0_34], %55 {strides = array<i32>} : memref<1x4x8x128xf32, #tpu.memory_space<vmem>>, vector<1x1x8x128xf32>,
    %c0_35 = arith.constant 0 : index
    %c3 = arith.constant 3 : index
    %c0_36 = arith.constant 0 : index
    %c0_37 = arith.constant 0 : index
    %56 = vector.load %arg4[%c0_35, %c3, %c0_36, %c0_37] : memref<1x4x8x128xf32, #tpu.memory_space<vmem>>, vector<1x1x8x128xf32>
    %57 = vector.shape_cast %56 : vector<1x1x8x128xf32> to vector<8x128xf32>
    %58 = arith.addf %57, %37 : vector<8x128xf32>
    %c0_38 = arith.constant 0 : index
    %c3_39 = arith.constant 3 : index
    %c0_40 = arith.constant 0 : index
    %c0_41 = arith.constant 0 : index
    %59 = vector.load %arg4[%c0_38, %c3_39, %c0_40, %c0_41] : memref<1x4x8x128xf32, #tpu.memory_space<vmem>>, vector<1x1x8x128xf32>
    %60 = vector.shape_cast %59 : vector<1x1x8x128xf32> to vector<8x128xf32>
    %61 = vector.shape_cast %58 : vector<8x128xf32> to vector<1x1x8x128xf32>
    tpu.vector_store %arg4[%c0_38, %c3_39, %c0_40, %c0_41], %61 {strides = array<i32>} : memref<1x4x8x128xf32, #tpu.memory_space<vmem>>, vector<1x1x8x128xf32>,
    return
  }
  func.func @transform_0(%arg0: i32, %arg1: i32) -> (i32, i32, i32) {
    %c0_i32 = arith.constant 0 : i32
    %c0_i32_0 = arith.constant 0 : i32
    return %arg0, %arg1, %c0_i32 : i32, i32, i32
  }
  func.func @transform_1(%arg0: i32, %arg1: i32) -> (i32, i32, i32) {
    %c0_i32 = arith.constant 0 : i32
    %c0_i32_0 = arith.constant 0 : i32
    return %arg0, %arg1, %c0_i32 : i32, i32, i32
  }
  func.func @transform_2(%arg0: i32, %arg1: i32) -> (i32, i32, i32, i32) {
    %c0_i32 = arith.constant 0 : i32
    %c0_i32_0 = arith.constant 0 : i32
    %c0_i32_1 = arith.constant 0 : i32
    %c0_i32_2 = arith.constant 0 : i32
    return %arg0, %c0_i32, %c0_i32_0, %c0_i32_1 : i32, i32, i32, i32
  }
}

</mosaic_0001>

<llo_original>
// kernel: tpu_custom_call.1
$region0: #{tpu_custom_call.1}
  #allocation0 [shape = 'u32[]', space=smem, size = 0x4, offset = 0x4, fixed_abs, tag = 'smem constant byte address 0x4 - core index']
  #allocation1 [shape = 'u32[72,128]{1,0:T(1,128)}', space=vmem, size = 0x9000, scoped, tag = 'internal scratch']
  %s0 = inlined_call_operand.hbm [shape: f32[1,16,128], index: 0, kind: input, shape index: {}]
  %s1 = inlined_call_operand.hbm [shape: f32[1,16,128], index: 1, kind: input, shape index: {}]
  %s2 = inlined_call_operand.hbm [shape: f32[1,4,8,128], index: 2, kind: output, shape index: {}]
  %s3 = sld [smem:[#allocation0]]
  $region30: #{tpu_custom_call.1} parent=0
    _
  %s5 = ssub.s32 1, %s3
  %s6 = scalar_select 0, %s5, %s3
  $region1: #{tpu_custom_call.1} parent=0
    #allocation2 [shape = 'u8[8192]{0}', space=vmem, size = 0x2000, scoped, tag = 'input window, operand 0, single buffered']
    #allocation3 [shape = 's32[1]{0}', space=sflag, size = 0x4, scoped, tag = 'scoped memory for tpu_custom_call.1']
    #allocation4 [shape = 's32[1]{0}', space=sflag, size = 0x4, scoped, tag = 'scoped memory for tpu_custom_call.1']
    #allocation5 [shape = 'u8[8192]{0}', space=vmem, size = 0x2000, scoped, tag = 'input window, operand 1, single buffered']
    #allocation6 [shape = 's32[1]{0}', space=sflag, size = 0x4, scoped, tag = 'scoped memory for tpu_custom_call.1']
    #allocation7 [shape = 'u8[16384]{0}', space=vmem, size = 0x4000, scoped, tag = 'output window, operand 0, single buffered']
    %7 = vsyncpa [#allocation3], 0
    %8 = vsyncpa [#allocation6], 0
    %9 = vsyncpa [#allocation4], 0
    // Predicated region
    $region2: #{tpu_custom_call.1} parent=1 // pred_check
      _
    $region3: #{tpu_custom_call.1} parent=1 // pred_check_branch
      %11 = sbr.rel (0) target = $region5
    $region4: #{tpu_custom_call.1} parent=1 // pred_region
      %13 = vsyncadd [#allocation3], 0
      %s14 = sshll.u32 %s0, 4
      %s15 = int_to_ptr.hbm [resolvable:$true] %s14
      %s16 = sshll.u32 [#allocation2], 4
      %s17 = int_to_ptr.vmem [resolvable:$true] %s16
      %22 = dma.hbm_to_vmem [thread:$0]  %s15, 256, %s17, [#allocation3], 128, 128, 8
    $region5: #{tpu_custom_call.1} parent=1 // pred_fallthru
      _
    // Predicated region
    $region6: #{tpu_custom_call.1} parent=1 // pred_check
      _
    $region7: #{tpu_custom_call.1} parent=1 // pred_check_branch
      %24 = sbr.rel (0) target = $region9
    $region8: #{tpu_custom_call.1} parent=1 // pred_region
      %26 = vsyncadd [#allocation6], 0
      %s27 = sshll.u32 %s1, 4
      %s28 = int_to_ptr.hbm [resolvable:$true] %s27
      %s29 = sshll.u32 [#allocation5], 4
      %s30 = int_to_ptr.vmem [resolvable:$true] %s29
      %35 = dma.hbm_to_vmem [thread:$0]  %s28, 256, %s30, [#allocation6], 128, 128, 8
    $region9: #{tpu_custom_call.1} parent=1 // pred_fallthru
      _
    // Predicated region
    $region10: #{tpu_custom_call.1} parent=1 // pred_check
      _
    $region11: #{tpu_custom_call.1} parent=1 // pred_check_branch
      %37 = sbr.rel (0) target = $region13
    $region12: #{tpu_custom_call.1} parent=1 // pred_region
      %39 = dma.done [#allocation3], 256
    $region13: #{tpu_custom_call.1} parent=1 // pred_fallthru
      _
    // Predicated region
    $region14: #{tpu_custom_call.1} parent=1 // pred_check
      _
    $region15: #{tpu_custom_call.1} parent=1 // pred_check_branch
      %41 = sbr.rel (0) target = $region17
    $region16: #{tpu_custom_call.1} parent=1 // pred_region
      %43 = dma.done [#allocation6], 256
    $region17: #{tpu_custom_call.1} parent=1 // pred_fallthru
      _
    %p44 = scmp.eq.s32.totalorder 0, 0
    // Predicated region
    $region18: #{tpu_custom_call.1} parent=1 // pred_check
      %p45 = pneg %p44
    $region19: #{tpu_custom_call.1} parent=1 // pred_check_branch
      %47 = sbr.rel (%p45) target = $region21
    $region20: #{tpu_custom_call.1} parent=1 // pred_region
      %48 = vst [vmem:[#allocation7] sm:$0xff] 0.0
      %49 = vst [vmem:[#allocation7 + $0x8] sm:$0xff] 0.0
      %50 = vst [vmem:[#allocation7 + $0x10] sm:$0xff] 0.0
      %51 = vst [vmem:[#allocation7 + $0x18] sm:$0xff] 0.0
    $region21: #{tpu_custom_call.1} parent=1 // pred_fallthru
      _
    %v52 = vld [vmem:[#allocation2] sm:$0xff]
    %v53 = vld [vmem:[#allocation2 + $0x8] sm:$0xff]
    %v54 = vld [vmem:[#allocation5] sm:$0xff]
    %v55 = vld [vmem:[#allocation5 + $0x8] sm:$0xff]
    %v56 = vlog2.pop %v52
    %v57 = vmul.f32 %v56, 0.6931472
    %v58 = vlog2.pop %v53
    %v59 = vmul.f32 %v58, 0.6931472
    %v60 = vmax.f32 %v57, -100.0
    %v61 = vmax.f32 %v59, -100.0
    %v62 = vsub.f32 1.0, %v52
    %v63 = vsub.f32 1.0, %v53
    %v64 = vlog2.pop %v62
    %v65 = vmul.f32 %v64, 0.6931472
    %v66 = vlog2.pop %v63
    %v67 = vmul.f32 %v66, 0.6931472
    %v68 = vmax.f32 %v65, -100.0
    %v69 = vmax.f32 %v67, -100.0
    %v70 = vsub.f32 %v60, %v68
    %v71 = vsub.f32 %v61, %v69
    %v72 = vmul.f32 %v54, %v70
    %v73 = vmul.f32 %v55, %v71
    %v74 = vadd.f32 %v68, %v72
    %v75 = vadd.f32 %v69, %v73
    %v76 = vsub.f32 0.0, %v74
    %v77 = vsub.f32 0.0, %v75
    %v78 = vadd.f32 %v76, %v77
    %v79 = vadd.f32 %v78, 0.0
    %v80 = vmul.f32 %v52, %v54
    %v81 = vmul.f32 %v53, %v55
    %v82 = vadd.f32 %v80, %v81
    %v83 = vadd.f32 %v82, 0.0
    %v84 = vadd.f32 %v52, %v53
    %v85 = vadd.f32 %v84, 0.0
    %v86 = vadd.f32 %v54, %v55
    %v87 = vadd.f32 %v86, 0.0
    %v88 = vld [vmem:[#allocation7] sm:$0xff]
    %v89 = vadd.f32 %v88, %v79
    %90 = vst [vmem:[#allocation7] sm:$0xff] %v89
    %s91 = scalar_lea.vmem [#allocation7], 8
    %v92 = vld [vmem:[%s91] sm:$0xff]
    %v93 = vadd.f32 %v92, %v83
    %94 = vst [vmem:[%s91] sm:$0xff] %v93
    %s95 = scalar_lea.vmem [#allocation7], 16
    %v96 = vld [vmem:[%s95] sm:$0xff]
    %v97 = vadd.f32 %v96, %v85
    %98 = vst [vmem:[%s95] sm:$0xff] %v97
    %s99 = scalar_lea.vmem [#allocation7], 24
    %v100 = vld [vmem:[%s99] sm:$0xff]
    %v101 = vadd.f32 %v100, %v87
    %102 = vst [vmem:[%s99] sm:$0xff] %v101
    // Predicated region
    $region22: #{tpu_custom_call.1} parent=1 // pred_check
      _
    $region23: #{tpu_custom_call.1} parent=1 // pred_check_branch
      %104 = sbr.rel (0) target = $region25
    $region24: #{tpu_custom_call.1} parent=1 // pred_region
      %106 = vsyncadd [#allocation4], 0
      %s107 = sshll.u32 [#allocation7], 4
      %s108 = int_to_ptr.vmem [resolvable:$true] %s107
      %s109 = sshll.u32 %s2, 4
      %s110 = int_to_ptr.hbm [resolvable:$true] %s109
      %115 = dma.vmem_to_hbm [thread:$0]  %s108, 512, %s110, [#allocation4], 128, 128, 8
    $region25: #{tpu_custom_call.1} parent=1 // pred_fallthru
      _
    // Predicated region
    $region26: #{tpu_custom_call.1} parent=1 // pred_check
      _
    $region27: #{tpu_custom_call.1} parent=1 // pred_check_branch
      %117 = sbr.rel (0) target = $region29
    $region28: #{tpu_custom_call.1} parent=1 // pred_region
      %119 = dma.done [#allocation4], 512
    $region29: #{tpu_custom_call.1} parent=1 // pred_fallthru
      _
    %120 = vsyncpa [#allocation3], 1
    %121 = vsyncpa [#allocation6], 1
    %122 = vsyncpa [#allocation4], 1

</llo_original>
